<compile_context>
chip_gen: v5e
topology: v5e:2x2
jax: 0.10.0
libtpu: 0.0.40
codegen_flags: <defaults>
</compile_context>

<pallas_src>
import jax
import jax.numpy as jnp
from jax import lax
from jax.experimental import pallas as pl
from jax.experimental.pallas import tpu as pltpu

HIDDEN = 256
HEAD_ROWS = 8          # transposed final layer padded to 8 sublane rows
TILE_B_MAX = 1024      # batch tile; ~2.5 MB VMEM footprint at 1024, safe on all gens


def _value_net_kernel(x_ref, w1_ref, b1_ref, w2_ref, b2_ref, w3t_ref, b3_ref,
                      o_ref):
    f32 = jnp.float32
    bf16 = jnp.bfloat16

    # Layer 1: [TILE_B, D_in]bf16 @ [D_in, 256]bf16 -> f32 acc, bias+relu in f32
    h1 = jnp.dot(x_ref[...].astype(bf16), w1_ref[...],
                 preferred_element_type=f32)
    h1 = jnp.maximum(h1 + b1_ref[...], 0.0)

    # Layer 2: [TILE_B, 256]bf16 @ [256, 256]bf16 -> f32 acc, bias+relu in f32
    h2 = jnp.dot(h1.astype(bf16), w2_ref[...], preferred_element_type=f32)
    h2 = jnp.maximum(h2 + b2_ref[...], 0.0)

    # Layer 3 (lane-packed scalar head): [8,256]bf16 x [TILE_B,256]bf16 contracted
    # on the 256 axis -> [8, TILE_B] f32; only row 0 of w3t is real.
    out8 = lax.dot_general(
        w3t_ref[...], h2.astype(bf16),
        dimension_numbers=(((1,), (1,)), ((), ())),
        preferred_element_type=f32)
    # Write one lane-dense (1, TILE_B) row: TILE_B scalar results packed on lanes.
    o_ref[...] = (out8[0:1, :] + b3_ref[...]).astype(o_ref.dtype)


def _pick_tile_b(b8):
    """Batch tile: multiple of 8, <= TILE_B_MAX, and >= 2 tiles for big batches
    so the 'parallel' batch axis can shard across v7x's two TensorCores."""
    if b8 <= 512:
        return b8
    half = ((b8 // 2 + 7) // 8) * 8
    return min(TILE_B_MAX, half)


@jax.jit
def value_network_forward(state, params):
    """Fused ValueNetwork forward pass as a batch-tiled Pallas kernel.

    state:  [B, D_in] float32
    params: dict from init_value_network_params (bf16 weights, f32 biases).
    returns: [B, 1] float32
    """
    B, D_in = state.shape

    b8 = ((B + 7) // 8) * 8                      # sublane-aligned batch
    tile_b = _pick_tile_b(b8)
    num_tiles = pl.cdiv(b8, tile_b)
    b_pad = num_tiles * tile_b
    if b_pad != B:
        state = jnp.pad(state, ((0, b_pad - B), (0, 0)))

    # Weights/biases use constant index_maps -> fetched once, VMEM-resident.
    const2 = lambda i: (0, 0)
    in_specs = [
        pl.BlockSpec((tile_b, D_in), lambda i: (i, 0)),    # streamed activations
        pl.BlockSpec((D_in, HIDDEN), const2),              # w1 (bf16)
        pl.BlockSpec((1, HIDDEN), const2),                 # b1 (f32)
        pl.BlockSpec((HIDDEN, HIDDEN), const2),            # w2 (bf16)
        pl.BlockSpec((1, HIDDEN), const2),                 # b2 (f32)
        pl.BlockSpec((HEAD_ROWS, HIDDEN), const2),         # w3t (bf16, row 0 real)
        pl.BlockSpec((1, 1), const2),                      # b3 (f32)
    ]
    # Lane-packed output: one (1, tile_b) row per batch tile.
    out_spec = pl.BlockSpec((1, tile_b), lambda i: (i, 0))

    flops = 2 * b_pad * (D_in * HIDDEN + HIDDEN * HIDDEN + HIDDEN * HEAD_ROWS)
    bytes_accessed = (
        4 * b_pad * D_in                                       # state in (f32)
        + 2 * (D_in * HIDDEN + HIDDEN * HIDDEN                 # bf16 weights
               + HEAD_ROWS * HIDDEN)
        + 4 * (2 * HIDDEN + 1)                                 # f32 biases
        + 4 * b_pad)                                           # packed output

    out_packed = pl.pallas_call(
        _value_net_kernel,
        out_shape=jax.ShapeDtypeStruct((num_tiles, tile_b), jnp.float32),
        grid=(num_tiles,),
        in_specs=in_specs,
        out_specs=out_spec,
        compiler_params=pltpu.CompilerParams(
            dimension_semantics=("parallel",),
        ),
        cost_estimate=pl.CostEstimate(
            flops=flops, transcendentals=0, bytes_accessed=bytes_accessed),
    )(state, params["w1"], params["b1"], params["w2"], params["b2"],
      params["w3t"], params["b3"])

    # Row i of out_packed holds batch rows [i*tile_b, (i+1)*tile_b); row-major
    # flatten restores batch order.  Drop batch padding.
    return out_packed.reshape(b_pad, 1)[:B]


def _xavier_uniform(key, fan_in, fan_out, dtype=jnp.bfloat16):
    # Matches torch.nn.init.xavier_uniform_ semantics (gain=1); stored
    # [fan_in, fan_out] (transposed vs. nn.Linear.weight), cast to bf16.
    bound = (6.0 / (fan_in + fan_out)) ** 0.5
    w = jax.random.uniform(key, (fan_in, fan_out), jnp.float32,
                           minval=-bound, maxval=bound)
    return w.astype(dtype)


def init_value_network_params(key, num_inputs, hidden=HIDDEN):
    k1, k2, k3 = jax.random.split(key, 3)
    # Final layer pre-packed once: transposed [1, hidden] row padded to 8 rows.
    w3 = _xavier_uniform(k3, hidden, 1)                      # [hidden, 1] bf16
    w3t = jnp.zeros((HEAD_ROWS, hidden), jnp.bfloat16).at[0, :].set(w3[:, 0])
    return {
        "w1": _xavier_uniform(k1, num_inputs, hidden),       # bf16
        "b1": jnp.zeros((1, hidden), jnp.float32),
        "w2": _xavier_uniform(k2, hidden, hidden),           # bf16
        "b2": jnp.zeros((1, hidden), jnp.float32),
        "w3t": w3t,                                          # bf16, row 0 real
        "b3": jnp.zeros((1, 1), jnp.float32),
    }


def _reference_forward(state, params):
    # Pure-JAX reference with the same precision recipe (bf16 dot inputs,
    # f32 accumulation and f32 bias/ReLU).
    f32, bf = jnp.float32, jnp.bfloat16
    h = jnp.dot(state.astype(bf), params["w1"], preferred_element_type=f32)
    h = jnp.maximum(h + params["b1"], 0.0)
    h = jnp.dot(h.astype(bf), params["w2"], preferred_element_type=f32)
    h = jnp.maximum(h + params["b2"], 0.0)
    w3 = params["w3t"][0:1, :]                               # [1, hidden] bf16
    out = jnp.dot(h.astype(bf), w3.T, preferred_element_type=f32)
    return out + params["b3"]


if __name__ == "__main__":
    key = jax.random.PRNGKey(0)
    k_param, k_state = jax.random.split(key)

    batch = 8
    num_inputs = 32

    params = init_value_network_params(k_param, num_inputs)
    state = jax.random.normal(k_state, (batch, num_inputs), jnp.float32)

    out = jax.block_until_ready(value_network_forward(state, params))
    ref = _reference_forward(state, params)
    assert out.shape == (batch, 1), out.shape
    assert jnp.allclose(out, ref, atol=1e-3, rtol=1e-3), "mismatch vs reference"

    # Also exercise the multi-tile / non-multiple-of-tile batch path.
    big_state = jax.random.normal(k_state, (1029, num_inputs), jnp.float32)
    big_out = jax.block_until_ready(value_network_forward(big_state, params))
    big_ref = _reference_forward(big_state, params)
    assert big_out.shape == (1029, 1), big_out.shape
    assert jnp.allclose(big_out, big_ref, atol=1e-3, rtol=1e-3), "big mismatch"

    print("KERNEL_OK")
</pallas_src>

<mosaic_0001>
module attributes {stable_mosaic.version = 11 : i64} {
  func.func @_value_net_kernel(%arg0: i32, %arg1: memref<8x32xf32, #tpu.memory_space<vmem>>, %arg2: memref<32x256xbf16, #tpu.memory_space<vmem>>, %arg3: memref<1x256xf32, #tpu.memory_space<vmem>>, %arg4: memref<256x256xbf16, #tpu.memory_space<vmem>>, %arg5: memref<1x256xf32, #tpu.memory_space<vmem>>, %arg6: memref<8x256xbf16, #tpu.memory_space<vmem>>, %arg7: memref<1x1xf32, #tpu.memory_space<vmem>>, %arg8: memref<1x8xf32, #tpu.memory_space<vmem>>) attributes {dimension_semantics = [#tpu.dimension_semantics<parallel>], iteration_bounds = array<i64: 1>, scalar_prefetch = 0 : i64, scratch_operands = 0 : i64, tpu.core_type = #tpu.core_type<tc>, window_params = [{transform_indices = @transform_0, window_bounds = array<i64: 8, 32>}, {pipeline_mode = #tpu.pipeline_mode<synchronous>, transform_indices = @transform_1, window_bounds = array<i64: 32, 256>}, {pipeline_mode = #tpu.pipeline_mode<synchronous>, transform_indices = @transform_2, window_bounds = array<i64: 1, 256>}, {pipeline_mode = #tpu.pipeline_mode<synchronous>, transform_indices = @transform_3, window_bounds = array<i64: 256, 256>}, {pipeline_mode = #tpu.pipeline_mode<synchronous>, transform_indices = @transform_4, window_bounds = array<i64: 1, 256>}, {pipeline_mode = #tpu.pipeline_mode<synchronous>, transform_indices = @transform_5, window_bounds = array<i64: 8, 256>}, {pipeline_mode = #tpu.pipeline_mode<synchronous>, transform_indices = @transform_6, window_bounds = array<i64: 1, 1>}, {transform_indices = @transform_7, window_bounds = array<i64: 1, 8>}]} {
    %c0 = arith.constant 0 : index
    %c0_0 = arith.constant 0 : index
    %0 = vector.load %arg1[%c0, %c0_0] : memref<8x32xf32, #tpu.memory_space<vmem>>, vector<8x32xf32>
    %1 = arith.truncf %0 : vector<8x32xf32> to vector<8x32xbf16>
    %c0_1 = arith.constant 0 : index
    %c0_2 = arith.constant 0 : index
    %2 = vector.load %arg2[%c0_1, %c0_2] : memref<32x256xbf16, #tpu.memory_space<vmem>>, vector<32x256xbf16>
    %cst = arith.constant dense<0.000000e+00> : vector<8x256xf32>
    %3 = tpu.matmul %1, %2, %cst {dimension_numbers = #tpu.dot_dimension_numbers<[1], [0], [0], [1], [0, 0, 1, 1], [], []>} : vector<8x32xbf16>, vector<32x256xbf16>, vector<8x256xf32> -> vector<8x256xf32>
    %c0_3 = arith.constant 0 : index
    %c0_4 = arith.constant 0 : index
    %4 = vector.load %arg3[%c0_3, %c0_4] : memref<1x256xf32, #tpu.memory_space<vmem>>, vector<1x256xf32>
    %5 = vector.broadcast %4 : vector<1x256xf32> to vector<8x256xf32>
    %6 = arith.addf %3, %5 : vector<8x256xf32>
    %cst_5 = arith.constant 0.000000e+00 : f32
    %7 = vector.broadcast %cst_5 : f32 to vector<8x256xf32>
    %8 = arith.maximumf %6, %7 : vector<8x256xf32>
    %9 = arith.truncf %8 : vector<8x256xf32> to vector<8x256xbf16>
    %c0_6 = arith.constant 0 : index
    %c0_7 = arith.constant 0 : index
    %10 = vector.load %arg4[%c0_6, %c0_7] : memref<256x256xbf16, #tpu.memory_space<vmem>>, vector<256x256xbf16>
    %cst_8 = arith.constant dense<0.000000e+00> : vector<8x256xf32>
    %11 = tpu.matmul %9, %10, %cst_8 {dimension_numbers = #tpu.dot_dimension_numbers<[1], [0], [0], [1], [0, 0, 1, 1], [], []>} : vector<8x256xbf16>, vector<256x256xbf16>, vector<8x256xf32> -> vector<8x256xf32>
    %c0_9 = arith.constant 0 : index
    %c0_10 = arith.constant 0 : index
    %12 = vector.load %arg5[%c0_9, %c0_10] : memref<1x256xf32, #tpu.memory_space<vmem>>, vector<1x256xf32>
    %13 = vector.broadcast %12 : vector<1x256xf32> to vector<8x256xf32>
    %14 = arith.addf %11, %13 : vector<8x256xf32>
    %cst_11 = arith.constant 0.000000e+00 : f32
    %15 = vector.broadcast %cst_11 : f32 to vector<8x256xf32>
    %16 = arith.maximumf %14, %15 : vector<8x256xf32>
    %c0_12 = arith.constant 0 : index
    %c0_13 = arith.constant 0 : index
    %17 = vector.load %arg6[%c0_12, %c0_13] : memref<8x256xbf16, #tpu.memory_space<vmem>>, vector<8x256xbf16>
    %18 = arith.truncf %16 : vector<8x256xf32> to vector<8x256xbf16>
    %cst_14 = arith.constant dense<0.000000e+00> : vector<8x8xf32>
    %19 = tpu.matmul %17, %18, %cst_14 {dimension_numbers = #tpu.dot_dimension_numbers<[1], [1], [0], [0], [0, 0, 1, 0], [], []>} : vector<8x256xbf16>, vector<8x256xbf16>, vector<8x8xf32> -> vector<8x8xf32>
    %20 = vector.extract_strided_slice %19 {offsets = [0, 0], sizes = [1, 8], strides = [1, 1]} : vector<8x8xf32> to vector<1x8xf32>
    %c0_15 = arith.constant 0 : index
    %c0_16 = arith.constant 0 : index
    %21 = vector.load %arg7[%c0_15, %c0_16] : memref<1x1xf32, #tpu.memory_space<vmem>>, vector<1x1xf32>
    %22 = vector.broadcast %21 : vector<1x1xf32> to vector<1x8xf32>
    %23 = arith.addf %20, %22 : vector<1x8xf32>
    %c0_17 = arith.constant 0 : index
    %c0_18 = arith.constant 0 : index
    %24 = vector.load %arg8[%c0_17, %c0_18] : memref<1x8xf32, #tpu.memory_space<vmem>>, vector<1x8xf32>
    tpu.vector_store %arg8[%c0_17, %c0_18], %23 {strides = array<i32>} : memref<1x8xf32, #tpu.memory_space<vmem>>, vector<1x8xf32>,
    return
  }
  func.func @transform_0(%arg0: i32) -> (i32, i32) {
    %c0_i32 = arith.constant 0 : i32
    %c0_i32_0 = arith.constant 0 : i32
    return %arg0, %c0_i32 : i32, i32
  }
  func.func @transform_1(%arg0: i32) -> (i32, i32) {
    %c0_i32 = arith.constant 0 : i32
    %c0_i32_0 = arith.constant 0 : i32
    %c0_i32_1 = arith.constant 0 : i32
    return %c0_i32, %c0_i32_0 : i32, i32
  }
  func.func @transform_2(%arg0: i32) -> (i32, i32) {
    %c0_i32 = arith.constant 0 : i32
    %c0_i32_0 = arith.constant 0 : i32
    %c0_i32_1 = arith.constant 0 : i32
    return %c0_i32, %c0_i32_0 : i32, i32
  }
  func.func @transform_3(%arg0: i32) -> (i32, i32) {
    %c0_i32 = arith.constant 0 : i32
    %c0_i32_0 = arith.constant 0 : i32
    %c0_i32_1 = arith.constant 0 : i32
    return %c0_i32, %c0_i32_0 : i32, i32
  }
  func.func @transform_4(%arg0: i32) -> (i32, i32) {
    %c0_i32 = arith.constant 0 : i32
    %c0_i32_0 = arith.constant 0 : i32
    %c0_i32_1 = arith.constant 0 : i32
    return %c0_i32, %c0_i32_0 : i32, i32
  }
  func.func @transform_5(%arg0: i32) -> (i32, i32) {
    %c0_i32 = arith.constant 0 : i32
    %c0_i32_0 = arith.constant 0 : i32
    %c0_i32_1 = arith.constant 0 : i32
    return %c0_i32, %c0_i32_0 : i32, i32
  }
  func.func @transform_6(%arg0: i32) -> (i32, i32) {
    %c0_i32 = arith.constant 0 : i32
    %c0_i32_0 = arith.constant 0 : i32
    %c0_i32_1 = arith.constant 0 : i32
    return %c0_i32, %c0_i32_0 : i32, i32
  }
  func.func @transform_7(%arg0: i32) -> (i32, i32) {
    %c0_i32 = arith.constant 0 : i32
    %c0_i32_0 = arith.constant 0 : i32
    return %arg0, %c0_i32 : i32, i32
  }
}

</mosaic_0001>

<llo_original>
// kernel: value_network_forward.1
$region0: #{value_network_forward.1}
  #allocation0 [shape = 'u32[]', space=smem, size = 0x4, offset = 0x4, fixed_abs, tag = 'smem constant byte address 0x4 - core index']
  #allocation1 [shape = 'u32[72,128]{1,0:T(1,128)}', space=vmem, size = 0x9000, scoped, tag = 'internal scratch']
  #allocation2 [shape = 'f32[1,1]{1,0:T(1,128)S(1)}', space=vmem, size = 0x200, scoped, tag = 'scoped memory for value_network_forward.1']
  %s0 = inlined_call_operand.hbm [shape: f32[8,32], index: 0, kind: input, shape index: {}]
  %s1 = inlined_call_operand.hbm [shape: bf16[32,256], index: 1, kind: input, shape index: {}]
  %s2 = inlined_call_operand.vmem [shape: f32[1,256], index: 2, kind: input, shape index: {}]
  %s3 = inlined_call_operand.hbm [shape: bf16[256,256], index: 3, kind: input, shape index: {}]
  %s4 = inlined_call_operand.hbm [shape: f32[1,256], index: 4, kind: input, shape index: {}]
  %s5 = inlined_call_operand.hbm [shape: bf16[8,256], index: 5, kind: input, shape index: {}]
  %s6 = inlined_call_operand.<no memory space> [shape: f32[1,1], index: 6, kind: input, shape index: {}]
  %s7 = inlined_call_operand.hbm [shape: f32[1,8], index: 7, kind: output, shape index: {}]
  %s8 = sld [smem:[#allocation0]]
  $region58: #{value_network_forward.1} parent=0
    _
  %s10 = ssub.s32 1, %s8
  %s11 = scalar_select 0, %s10, %s8
  %v12 = vstv %s6
  %13 = vst [vmem:[#allocation2] sm:$0x1] %v12
  $region1: #{value_network_forward.1} parent=0
    #allocation3 [shape = 'u8[4096]{0}', space=vmem, size = 0x1000, scoped, tag = 'input window, operand 0, single buffered']
    #allocation4 [shape = 's32[1]{0}', space=sflag, size = 0x4, scoped, tag = 'scoped memory for value_network_forward.1']
    #allocation5 [shape = 's32[1]{0}', space=sflag, size = 0x4, scoped, tag = 'scoped memory for value_network_forward.1']
    #allocation6 [shape = 'u8[16384]{0}', space=vmem, size = 0x4000, scoped, tag = 'input window, operand 1, single buffered']
    #allocation7 [shape = 's32[1]{0}', space=sflag, size = 0x4, scoped, tag = 'scoped memory for value_network_forward.1']
    #allocation8 [shape = 'u8[131072]{0}', space=vmem, size = 0x20000, scoped, tag = 'input window, operand 3, single buffered']
    #allocation9 [shape = 'u8[1024]{0}', space=vmem, size = 0x400, scoped, tag = 'input window, operand 4, single buffered']
    #allocation10 [shape = 's32[1]{0}', space=sflag, size = 0x4, scoped, tag = 'scoped memory for value_network_forward.1']
    #allocation11 [shape = 'u8[4096]{0}', space=vmem, size = 0x1000, scoped, tag = 'input window, operand 5, single buffered']
    #allocation12 [shape = 'u8[512]{0}', space=vmem, size = 0x400, scoped, tag = 'output window, operand 0, single buffered']
    %14 = vsyncpa [#allocation4], 0
    %15 = vsyncpa [#allocation7], 0
    %16 = vsyncpa [#allocation10], 0
    %17 = vsyncpa [#allocation5], 0
    // Predicated region
    $region2: #{value_network_forward.1} parent=1 // pred_check
      _
    $region3: #{value_network_forward.1} parent=1 // pred_check_branch
      %19 = sbr.rel (0) target = $region5
    $region4: #{value_network_forward.1} parent=1 // pred_region
      %21 = vsyncadd [#allocation4], 0
      %s23 = sshll.u32 %s0, 4
      %s24 = int_to_ptr.hbm [resolvable:$true] %s23
      %s25 = sshll.u32 [#allocation3], 4
      %s26 = int_to_ptr.vmem [resolvable:$true] %s25
      %28 = dma.hbm_to_vmem [thread:$0]  %s24, 128, %s26, [#allocation4]
    $region5: #{value_network_forward.1} parent=1 // pred_fallthru
      _
    // Predicated region
    $region6: #{value_network_forward.1} parent=1 // pred_check
      _
    $region7: #{value_network_forward.1} parent=1 // pred_check_branch
      %30 = sbr.rel (0) target = $region9
    $region8: #{value_network_forward.1} parent=1 // pred_region
      %32 = vsyncadd [#allocation7], 0
      %s33 = sshll.u32 %s1, 4
      %s34 = int_to_ptr.hbm [resolvable:$true] %s33
      %s35 = sshll.u32 [#allocation6], 4
      %s36 = int_to_ptr.vmem [resolvable:$true] %s35
      %41 = dma.hbm_to_vmem [thread:$0]  %s34, 512, %s36, [#allocation7], 128, 128, 8
    $region9: #{value_network_forward.1} parent=1 // pred_fallthru
      _
    // Predicated region
    $region10: #{value_network_forward.1} parent=1 // pred_check
      _
    $region11: #{value_network_forward.1} parent=1 // pred_check_branch
      %43 = sbr.rel (0) target = $region13
    $region12: #{value_network_forward.1} parent=1 // pred_region
      _
    $region13: #{value_network_forward.1} parent=1 // pred_fallthru
      _
    // Predicated region
    $region14: #{value_network_forward.1} parent=1 // pred_check
      _
    $region15: #{value_network_forward.1} parent=1 // pred_check_branch
      %45 = sbr.rel (0) target = $region17
    $region16: #{value_network_forward.1} parent=1 // pred_region
      %47 = vsyncadd [#allocation7], 0
      %s48 = sshll.u32 %s3, 4
      %s49 = int_to_ptr.hbm [resolvable:$true] %s48
      %s50 = sshll.u32 [#allocation8], 4
      %s51 = int_to_ptr.vmem [resolvable:$true] %s50
      %56 = dma.hbm_to_vmem [thread:$0]  %s49, 4096, %s51, [#allocation7], 128, 128, 8
    $region17: #{value_network_forward.1} parent=1 // pred_fallthru
      _
    // Predicated region
    $region18: #{value_network_forward.1} parent=1 // pred_check
      _
    $region19: #{value_network_forward.1} parent=1 // pred_check_branch
      %58 = sbr.rel (0) target = $region21
    $region20: #{value_network_forward.1} parent=1 // pred_region
      %60 = vsyncadd [#allocation10], 0
      %s62 = sshll.u32 %s4, 4
      %s63 = int_to_ptr.hbm [resolvable:$true] %s62
      %s64 = sshll.u32 [#allocation9], 4
      %s65 = int_to_ptr.vmem [resolvable:$true] %s64
      %67 = dma.hbm_to_vmem [thread:$0]  %s63, 32, %s65, [#allocation10]
    $region21: #{value_network_forward.1} parent=1 // pred_fallthru
      _
    // Predicated region
    $region22: #{value_network_forward.1} parent=1 // pred_check
      _
    $region23: #{value_network_forward.1} parent=1 // pred_check_branch
      %69 = sbr.rel (0) target = $region25
    $region24: #{value_network_forward.1} parent=1 // pred_region
      %71 = vsyncadd [#allocation10], 0
      %s73 = sshll.u32 %s5, 4
      %s74 = int_to_ptr.hbm [resolvable:$true] %s73
      %s75 = sshll.u32 [#allocation11], 4
      %s76 = int_to_ptr.vmem [resolvable:$true] %s75
      %78 = dma.hbm_to_vmem [thread:$0]  %s74, 128, %s76, [#allocation10]
    $region25: #{value_network_forward.1} parent=1 // pred_fallthru
      _
    // Predicated region
    $region26: #{value_network_forward.1} parent=1 // pred_check
      _
    $region27: #{value_network_forward.1} parent=1 // pred_check_branch
      %80 = sbr.rel (0) target = $region29
    $region28: #{value_network_forward.1} parent=1 // pred_region
      _
    $region29: #{value_network_forward.1} parent=1 // pred_fallthru
      _
    // Predicated region
    $region30: #{value_network_forward.1} parent=1 // pred_check
      _
    $region31: #{value_network_forward.1} parent=1 // pred_check_branch
      %82 = sbr.rel (0) target = $region33
    $region32: #{value_network_forward.1} parent=1 // pred_region
      %84 = dma.done [#allocation4], 128
    $region33: #{value_network_forward.1} parent=1 // pred_fallthru
      _
    // Predicated region
    $region34: #{value_network_forward.1} parent=1 // pred_check
      _
    $region35: #{value_network_forward.1} parent=1 // pred_check_branch
      %86 = sbr.rel (0) target = $region37
    $region36: #{value_network_forward.1} parent=1 // pred_region
      %88 = dma.done [#allocation7], 512
    $region37: #{value_network_forward.1} parent=1 // pred_fallthru
      _
    // Predicated region
    $region38: #{value_network_forward.1} parent=1 // pred_check
      _
    $region39: #{value_network_forward.1} parent=1 // pred_check_branch
      %90 = sbr.rel (0) target = $region41
    $region40: #{value_network_forward.1} parent=1 // pred_region
      %92 = dma.done [#allocation7], 4096
    $region41: #{value_network_forward.1} parent=1 // pred_fallthru
      _
    // Predicated region
    $region42: #{value_network_forward.1} parent=1 // pred_check
      _
    $region43: #{value_network_forward.1} parent=1 // pred_check_branch
      %94 = sbr.rel (0) target = $region45
    $region44: #{value_network_forward.1} parent=1 // pred_region
      %96 = dma.done [#allocation10], 32
    $region45: #{value_network_forward.1} parent=1 // pred_fallthru
      _
    // Predicated region
    $region46: #{value_network_forward.1} parent=1 // pred_check
      _
    $region47: #{value_network_forward.1} parent=1 // pred_check_branch
      %98 = sbr.rel (0) target = $region49
    $region48: #{value_network_forward.1} parent=1 // pred_region
      %100 = dma.done [#allocation10], 128
    $region49: #{value_network_forward.1} parent=1 // pred_fallthru
      _
    %v102 = vld [vmem:[#allocation3] sm:$0xff]
    %v103 = vpack.c.bf16 %v102, %v102
    %v104 = vld [vmem:[#allocation6] sm:$0xff]
    %v105 = vld [vmem:[#allocation6 + $0x8] sm:$0xff]
    %v106 = vld [vmem:[#allocation6 + $0x10] sm:$0xff]
    %v107 = vld [vmem:[#allocation6 + $0x18] sm:$0xff]
    %v108 = vld [vmem:[%s2] sm:$0x3]
    %v110 = vperm.slane %v108, 0
    %v111 = vperm.slane %v108, 1
    %v118 = vunpack.c.l.b16 %v104
    %v119 = vunpack.c.h.b16 %v104
    %v120 = vunpack.c.l.b16 %v105
    %v121 = vunpack.c.h.b16 %v105
    %v122 = vunpack.c.l.b16 %v106
    %v123 = vunpack.c.h.b16 %v106
    %v124 = vunpack.c.l.b16 %v107
    %v125 = vunpack.c.h.b16 %v107
    %v126 = vpack.c.b16 %v120, %v118
    %v127 = vpack.c.b16 %v121, %v119
    %v128 = vpack.c.b16 %v124, %v122
    %v129 = vpack.c.b16 %v125, %v123
    %vm134 = vcmask 261120
    %v136 = vsel %vm134, %v103, 0
    %138 = vmatpush.bf16.msra.mxu0 0
    %139 = vmatpush.bf16.msra.mxu0 0
    %140 = vmatpush.bf16.msra.mxu0 0
    %141 = vmatpush.bf16.msra.mxu0 0
    %142 = vmatpush.bf16.msra.mxu0 0
    %143 = vmatpush.bf16.msra.mxu0 0
    %144 = vmatpush.bf16.msra.mxu0 %v128
    %145 = vmatpush.bf16.msra.mxu0 %v126
    %146 = vmatmul.bf16.gmra.mxu0 %v136
    %v147 = vpop.f32.mrf.mxu0
    %v148 = vadd.f32 %v110, %v147
    %v149 = vpop.f32.mrf.mxu0
    %150 = vdwg.mxu0
    %151 = vmatpush.bf16.msra.mxu0 0
    %152 = vmatpush.bf16.msra.mxu0 0
    %153 = vmatpush.bf16.msra.mxu0 0
    %154 = vmatpush.bf16.msra.mxu0 0
    %155 = vmatpush.bf16.msra.mxu0 0
    %156 = vmatpush.bf16.msra.mxu0 0
    %157 = vmatpush.bf16.msra.mxu0 %v129
    %158 = vmatpush.bf16.msra.mxu0 %v127
    %159 = vmatmul.bf16.gmra.mxu0 %v136
    %v160 = vpop.f32.mrf.mxu0
    %v161 = vadd.f32 %v111, %v160
    %v162 = vpop.f32.mrf.mxu0
    %163 = vdwg.mxu0
    %v164 = vmax.f32 %v148, 0.0
    %v165 = vmax.f32 %v161, 0.0
    %v166 = vpack.c.bf16 %v164, %v164
    %v167 = vpack.c.bf16 %v165, %v165
    %v168 = vld [vmem:[#allocation8] sm:$0xff]
    %v169 = vld [vmem:[#allocation8 + $0x8] sm:$0xff]
    %v170 = vld [vmem:[#allocation8 + $0x10] sm:$0xff]
    %v171 = vld [vmem:[#allocation8 + $0x18] sm:$0xff]
    %v172 = vld [vmem:[#allocation8 + $0x20] sm:$0xff]
    %v173 = vld [vmem:[#allocation8 + $0x28] sm:$0xff]
    %v174 = vld [vmem:[#allocation8 + $0x30] sm:$0xff]
    %v175 = vld [vmem:[#allocation8 + $0x38] sm:$0xff]
    %v176 = vld [vmem:[#allocation8 + $0x40] sm:$0xff]
    %v177 = vld [vmem:[#allocation8 + $0x48] sm:$0xff]
    %v178 = vld [vmem:[#allocation8 + $0x50] sm:$0xff]
    %v179 = vld [vmem:[#allocation8 + $0x58] sm:$0xff]
    %v180 = vld [vmem:[#allocation8 + $0x60] sm:$0xff]
    %v181 = vld [vmem:[#allocation8 + $0x68] sm:$0xff]
    %v182 = vld [vmem:[#allocation8 + $0x70] sm:$0xff]
    %v183 = vld [vmem:[#allocation8 + $0x78] sm:$0xff]
    %v184 = vld [vmem:[#allocation8 + $0x80] sm:$0xff]
    %v185 = vld [vmem:[#allocation8 + $0x88] sm:$0xff]
    %v186 = vld [vmem:[#allocation8 + $0x90] sm:$0xff]
    %v187 = vld [vmem:[#allocation8 + $0x98] sm:$0xff]
    %v188 = vld [vmem:[#allocation8 + $0xa0] sm:$0xff]
    %v189 = vld [vmem:[#allocation8 + $0xa8] sm:$0xff]
    %v190 = vld [vmem:[#allocation8 + $0xb0] sm:$0xff]
    %v191 = vld [vmem:[#allocation8 + $0xb8] sm:$0xff]
    %v192 = vld [vmem:[#allocation8 + $0xc0] sm:$0xff]
    %v193 = vld [vmem:[#allocation8 + $0xc8] sm:$0xff]
    %v194 = vld [vmem:[#allocation8 + $0xd0] sm:$0xff]
    %v195 = vld [vmem:[#allocation8 + $0xd8] sm:$0xff]
    %v196 = vld [vmem:[#allocation8 + $0xe0] sm:$0xff]
    %v197 = vld [vmem:[#allocation8 + $0xe8] sm:$0xff]
    %v198 = vld [vmem:[#allocation8 + $0xf0] sm:$0xff]
    %v199 = vld [vmem:[#allocation8 + $0xf8] sm:$0xff]
    %v200 = vld [vmem:[#allocation9] sm:$0x3]
    %v202 = vperm.slane %v200, 0
    %v203 = vperm.slane %v200, 1
    %v238 = vunpack.c.l.b16 %v168
    %v239 = vunpack.c.h.b16 %v168
    %v240 = vunpack.c.l.b16 %v169
    %v241 = vunpack.c.h.b16 %v169
    %v242 = vunpack.c.l.b16 %v170
    %v243 = vunpack.c.h.b16 %v170
    %v244 = vunpack.c.l.b16 %v171
    %v245 = vunpack.c.h.b16 %v171
    %v246 = vunpack.c.l.b16 %v172
    %v247 = vunpack.c.h.b16 %v172
    %v248 = vunpack.c.l.b16 %v173
    %v249 = vunpack.c.h.b16 %v173
    %v250 = vunpack.c.l.b16 %v174
    %v251 = vunpack.c.h.b16 %v174
    %v252 = vunpack.c.l.b16 %v175
    %v253 = vunpack.c.h.b16 %v175
    %v254 = vunpack.c.l.b16 %v176
    %v255 = vunpack.c.h.b16 %v176
    %v256 = vunpack.c.l.b16 %v177
    %v257 = vunpack.c.h.b16 %v177
    %v258 = vunpack.c.l.b16 %v178
    %v259 = vunpack.c.h.b16 %v178
    %v260 = vunpack.c.l.b16 %v179
    %v261 = vunpack.c.h.b16 %v179
    %v262 = vunpack.c.l.b16 %v180
    %v263 = vunpack.c.h.b16 %v180
    %v264 = vunpack.c.l.b16 %v181
    %v265 = vunpack.c.h.b16 %v181
    %v266 = vunpack.c.l.b16 %v182
    %v267 = vunpack.c.h.b16 %v182
    %v268 = vunpack.c.l.b16 %v183
    %v269 = vunpack.c.h.b16 %v183
    %v270 = vunpack.c.l.b16 %v184
    %v271 = vunpack.c.h.b16 %v184
    %v272 = vunpack.c.l.b16 %v185
    %v273 = vunpack.c.h.b16 %v185
    %v274 = vunpack.c.l.b16 %v186
    %v275 = vunpack.c.h.b16 %v186
    %v276 = vunpack.c.l.b16 %v187
    %v277 = vunpack.c.h.b16 %v187
    %v278 = vunpack.c.l.b16 %v188
    %v279 = vunpack.c.h.b16 %v188
    %v280 = vunpack.c.l.b16 %v189
    %v281 = vunpack.c.h.b16 %v189
    %v282 = vunpack.c.l.b16 %v190
    %v283 = vunpack.c.h.b16 %v190
    %v284 = vunpack.c.l.b16 %v191
    %v285 = vunpack.c.h.b16 %v191
    %v286 = vunpack.c.l.b16 %v192
    %v287 = vunpack.c.h.b16 %v192
    %v288 = vunpack.c.l.b16 %v193
    %v289 = vunpack.c.h.b16 %v193
    %v290 = vunpack.c.l.b16 %v194
    %v291 = vunpack.c.h.b16 %v194
    %v292 = vunpack.c.l.b16 %v195
    %v293 = vunpack.c.h.b16 %v195
    %v294 = vunpack.c.l.b16 %v196
    %v295 = vunpack.c.h.b16 %v196
    %v296 = vunpack.c.l.b16 %v197
    %v297 = vunpack.c.h.b16 %v197
    %v298 = vunpack.c.l.b16 %v198
    %v299 = vunpack.c.h.b16 %v198
    %v300 = vunpack.c.l.b16 %v199
    %v301 = vunpack.c.h.b16 %v199
    %v302 = vpack.c.b16 %v240, %v238
    %v303 = vpack.c.b16 %v241, %v239
    %v304 = vpack.c.b16 %v244, %v242
    %v305 = vpack.c.b16 %v245, %v243
    %v306 = vpack.c.b16 %v248, %v246
    %v307 = vpack.c.b16 %v249, %v247
    %v308 = vpack.c.b16 %v252, %v250
    %v309 = vpack.c.b16 %v253, %v251
    %v310 = vpack.c.b16 %v256, %v254
    %v311 = vpack.c.b16 %v257, %v255
    %v312 = vpack.c.b16 %v260, %v258
    %v313 = vpack.c.b16 %v261, %v259
    %v314 = vpack.c.b16 %v264, %v262
    %v315 = vpack.c.b16 %v265, %v263
    %v316 = vpack.c.b16 %v268, %v266
    %v317 = vpack.c.b16 %v269, %v267
    %v318 = vpack.c.b16 %v272, %v270
    %v319 = vpack.c.b16 %v273, %v271
    %v320 = vpack.c.b16 %v276, %v274
    %v321 = vpack.c.b16 %v277, %v275
    %v322 = vpack.c.b16 %v280, %v278
    %v323 = vpack.c.b16 %v281, %v279
    %v324 = vpack.c.b16 %v284, %v282
    %v325 = vpack.c.b16 %v285, %v283
    %v326 = vpack.c.b16 %v288, %v286
    %v327 = vpack.c.b16 %v289, %v287
    %v328 = vpack.c.b16 %v292, %v290
    %v329 = vpack.c.b16 %v293, %v291
    %v330 = vpack.c.b16 %v296, %v294
    %v331 = vpack.c.b16 %v297, %v295
    %v332 = vpack.c.b16 %v300, %v298
    %v333 = vpack.c.b16 %v301, %v299
    %366 = vmatpush.bf16.msra.mxu0 %v316
    %367 = vmatpush.bf16.msra.mxu0 %v314
    %368 = vmatpush.bf16.msra.mxu0 %v312
    %369 = vmatpush.bf16.msra.mxu0 %v310
    %370 = vmatpush.bf16.msra.mxu0 %v308
    %371 = vmatpush.bf16.msra.mxu0 %v306
    %372 = vmatpush.bf16.msra.mxu0 %v304
    %373 = vmatpush.bf16.msra.mxu0 %v302
    %374 = vmatmul.bf16.gmra.mxu0 %v166
    %v375 = vpop.f32.mrf.mxu0
    %v376 = vadd.f32 %v202, %v375
    %v377 = vpop.f32.mrf.mxu0
    %378 = vdwg.mxu0
    %379 = vmatpush.bf16.msra.mxu0 %v332
    %380 = vmatpush.bf16.msra.mxu0 %v330
    %381 = vmatpush.bf16.msra.mxu0 %v328
    %382 = vmatpush.bf16.msra.mxu0 %v326
    %383 = vmatpush.bf16.msra.mxu0 %v324
    %384 = vmatpush.bf16.msra.mxu0 %v322
    %385 = vmatpush.bf16.msra.mxu0 %v320
    %386 = vmatpush.bf16.msra.mxu0 %v318
    %387 = vmatmul.bf16.gmra.mxu0 %v167
    %v388 = vpop.f32.mrf.mxu0
    %v389 = vadd.f32 %v376, %v388
    %v390 = vpop.f32.mrf.mxu0
    %391 = vdwg.mxu0
    %392 = vmatpush.bf16.msra.mxu0 %v317
    %393 = vmatpush.bf16.msra.mxu0 %v315
    %394 = vmatpush.bf16.msra.mxu0 %v313
    %395 = vmatpush.bf16.msra.mxu0 %v311
    %396 = vmatpush.bf16.msra.mxu0 %v309
    %397 = vmatpush.bf16.msra.mxu0 %v307
    %398 = vmatpush.bf16.msra.mxu0 %v305
    %399 = vmatpush.bf16.msra.mxu0 %v303
    %400 = vmatmul.bf16.gmra.mxu0 %v166
    %v401 = vpop.f32.mrf.mxu0
    %v402 = vadd.f32 %v203, %v401
    %v403 = vpop.f32.mrf.mxu0
    %404 = vdwg.mxu0
    %405 = vmatpush.bf16.msra.mxu0 %v333
    %406 = vmatpush.bf16.msra.mxu0 %v331
    %407 = vmatpush.bf16.msra.mxu0 %v329
    %408 = vmatpush.bf16.msra.mxu0 %v327
    %409 = vmatpush.bf16.msra.mxu0 %v325
    %410 = vmatpush.bf16.msra.mxu0 %v323
    %411 = vmatpush.bf16.msra.mxu0 %v321
    %412 = vmatpush.bf16.msra.mxu0 %v319
    %413 = vmatmul.bf16.gmra.mxu0 %v167
    %v414 = vpop.f32.mrf.mxu0
    %v415 = vadd.f32 %v402, %v414
    %v416 = vpop.f32.mrf.mxu0
    %417 = vdwg.mxu0
    %v418 = vmax.f32 %v389, 0.0
    %v419 = vmax.f32 %v415, 0.0
    %v420 = vld [vmem:[#allocation11] sm:$0xff]
    %v421 = vpack.c.bf16 %v418, %v418
    %v422 = vpack.c.bf16 %v419, %v419
    %v424 = vunpack.c.l.b16 %v420
    %v425 = vunpack.c.h.b16 %v420
    %v426 = vpack.c.b16 %v424, %v424
    %v427 = vpack.c.b16 %v425, %v425
    %430 = vmatpush.bf16.xpose.msra.mxu0 0
    %431 = vmatpush.bf16.xpose.msra.mxu0 0
    %432 = vmatpush.bf16.xpose.msra.mxu0 0
    %433 = vmatpush.bf16.xpose.msra.mxu0 0
    %434 = vmatpush.bf16.xpose.msra.mxu0 0
    %435 = vmatpush.bf16.xpose.msra.mxu0 0
    %436 = vmatpush.bf16.xpose.msra.mxu0 0
    %437 = vmatpush.bf16.xpose.msra.mxu0 %v421
    %438 = vmatmul.bf16.gmra.mxu0 %v426
    %v439 = vpop.f32.mrf.mxu0
    %v440 = vadd.f32 0.0, %v439
    %v441 = vpop.f32.mrf.mxu0
    %442 = vdwg.mxu0
    %443 = vmatpush.bf16.xpose.msra.mxu0 0
    %444 = vmatpush.bf16.xpose.msra.mxu0 0
    %445 = vmatpush.bf16.xpose.msra.mxu0 0
    %446 = vmatpush.bf16.xpose.msra.mxu0 0
    %447 = vmatpush.bf16.xpose.msra.mxu0 0
    %448 = vmatpush.bf16.xpose.msra.mxu0 0
    %449 = vmatpush.bf16.xpose.msra.mxu0 0
    %450 = vmatpush.bf16.xpose.msra.mxu0 %v422
    %451 = vmatmul.bf16.gmra.mxu0 %v427
    %v452 = vpop.f32.mrf.mxu0
    %v453 = vadd.f32 %v440, %v452
    %v454 = vpop.f32.mrf.mxu0
    %455 = vdwg.mxu0
    %v456 = vld [vmem:[#allocation2] sm:$0x1]
    %458 = vset.pattern.permute.xlu0 0
    %459 = vperm.xlu0 %458, %v456
    %v460 = vpop.permute.xlu0 %459
    %v462 = vperm.slane %v460, 0
    %v463 = vadd.f32 %v453, %v462
    %vm464 = vcmask 57344
    %465 = vst.msk [vmem:[#allocation12] sm:$0x1] %vm464, %v463
    // Predicated region
    $region50: #{value_network_forward.1} parent=1 // pred_check
      _
    $region51: #{value_network_forward.1} parent=1 // pred_check_branch
      %467 = sbr.rel (0) target = $region53
    $region52: #{value_network_forward.1} parent=1 // pred_region
      %469 = vsyncadd [#allocation5], 0
      %s471 = sshll.u32 [#allocation12], 4
      %s472 = int_to_ptr.vmem [resolvable:$true] %s471
      %s473 = sshll.u32 %s7, 4
      %s474 = int_to_ptr.hbm [resolvable:$true] %s473
      %476 = dma.vmem_to_hbm [thread:$0]  %s472, 16, %s474, [#allocation5]
    $region53: #{value_network_forward.1} parent=1 // pred_fallthru
      _
    // Predicated region
    $region54: #{value_network_forward.1} parent=1 // pred_check
      _
    $region55: #{value_network_forward.1} parent=1 // pred_check_branch
      %478 = sbr.rel (0) target = $region57
    $region56: #{value_network_forward.1} parent=1 // pred_region
      %480 = dma.done [#allocation5], 16
    $region57: #{value_network_forward.1} parent=1 // pred_fallthru
      _
    %481 = vsyncpa [#allocation4], 1
    %482 = vsyncpa [#allocation7], 1
    %483 = vsyncpa [#allocation10], 1
    %484 = vsyncpa [#allocation5], 1

</llo_original>
